<compile_context>
chip_gen: v6e
topology: v6e:2x2x1
jax: 0.10.0
libtpu: 0.0.40
codegen_flags: <defaults>
</compile_context>

<pallas_src>
import jax
import jax.numpy as jnp
from jax.experimental import pallas as pl
from jax.experimental.pallas import tpu as pltpu

_LANES = 128          # vreg lane width: last dim of the lane-dense slab
_SUBLANES = 8         # f32 sublane tile
_MIN_GRID_STEPS = 8   # keep enough grid steps for pipelining + v7x 2-TC sharding


def _round_up(x: int, m: int) -> int:
    return (x + m - 1) // m * m


def linreg_kernel(w_ref, b_ref, x_ref, o_ref):
    # w_ref / b_ref are (1,)-shaped scalars in SMEM; the broadcast multiply-add
    # runs full-width on the VPU over the lane-dense (tm, 128) tile.
    w = w_ref[0]
    b = b_ref[0]
    o_ref[...] = w * x_ref[...] + b


def _pick_tile(rows: int, tile_rows: int) -> int:
    """Largest f32-legal row-tile that still leaves ~_MIN_GRID_STEPS grid steps,
    capped at tile_rows (VMEM budget: 4 * tile_rows * 128 * 4 B with in+out
    double-buffering => 8 MiB at the default tile_rows=4096)."""
    tm = _round_up(max(pl.cdiv(rows, _MIN_GRID_STEPS), 1), _SUBLANES)
    return max(_SUBLANES, min(tile_rows, tm))


def _run_slab(w: jax.Array, b: jax.Array, slab: jax.Array, tm: int) -> jax.Array:
    rows = slab.shape[0]
    n = slab.size
    return pl.pallas_call(
        linreg_kernel,
        out_shape=jax.ShapeDtypeStruct(slab.shape, slab.dtype),
        grid=(pl.cdiv(rows, tm),),
        in_specs=[
            pl.BlockSpec(memory_space=pltpu.SMEM),           # weights (1,)
            pl.BlockSpec(memory_space=pltpu.SMEM),           # bias    (1,)
            pl.BlockSpec((tm, _LANES), lambda i: (i, 0)),    # x tile in VMEM
        ],
        out_specs=pl.BlockSpec((tm, _LANES), lambda i: (i, 0)),
        compiler_params=pltpu.CompilerParams(
            dimension_semantics=("parallel",),               # shard rows across TCs (v7x)
        ),
        cost_estimate=pl.CostEstimate(
            flops=2 * n, transcendentals=0, bytes_accessed=8 * n),
    )(w, b, slab)


def linear_regression_forward(w: jax.Array, b: jax.Array, x: jax.Array,
                              *, tile_rows: int = 4096) -> jax.Array:
    """y = w * x + b via Pallas for float32 x of arbitrary shape."""
    assert x.dtype == jnp.float32, "tiling below assumes float32 (8-row sublane tile)"
    orig_shape = x.shape
    n = x.size

    if n % _LANES == 0:
        # Fast path: contiguous reshape to a lane-dense slab is free (no pad, no
        # trailing slice, no extra HBM passes).  If rows is not a multiple of tm,
        # the ragged last block's out-of-bounds stores are masked by Pallas.
        rows = n // _LANES
        slab = x.reshape(rows, _LANES)
        tm = _pick_tile(rows, tile_rows)
        out = _run_slab(w, b, slab, tm)
        return out.reshape(orig_shape)

    # Slow path (n % 128 != 0): pad the flattened input so it forms whole 128-lane
    # rows, then slice the tail away.  This copies the array, so the dispatcher
    # keeps large unaligned inputs on the fused-XLA path instead.
    rows = pl.cdiv(n, _LANES)
    tm = _pick_tile(rows, tile_rows)
    rows_p = _round_up(rows, tm)
    padded = rows_p * _LANES
    flat = jnp.pad(x.reshape(-1), (0, padded - n))
    slab = flat.reshape(rows_p, _LANES)
    out = _run_slab(w, b, slab, tm)
    return out.reshape(-1)[:n].reshape(orig_shape)


def linear_regression(w: jax.Array, b: jax.Array, x: jax.Array,
                      *, pallas_min_elems: int = 1 << 20) -> jax.Array:
    """Production dispatch: only large, lane-aligned inputs go through Pallas.

    For small or non-128-aligned inputs the XLA-fused `w*x+b` is already at HBM
    roofline with no launch / pad / slice overhead."""
    if x.size < pallas_min_elems or x.size % _LANES != 0:
        return w * x + b
    return linear_regression_forward(w, b, x)


if __name__ == "__main__":
    # Input identical to the PyTorch script: arange(0, 1, 0.02).unsqueeze(1) -> (50, 1)
    start, end, step = 0.0, 1.0, 0.02
    x = jnp.arange(start, end, step, dtype=jnp.float32).reshape(-1, 1)

    # Deterministic "randn"-style parameter init (shapes (1,), as in the module).
    key = jax.random.PRNGKey(0)
    kw, kb = jax.random.split(key)
    weights = jax.random.normal(kw, (1,), dtype=jnp.float32)
    bias = jax.random.normal(kb, (1,), dtype=jnp.float32)

    # 1) Module-spec shape (50, 1): unaligned slow path, single (8, 128) block.
    y = jax.block_until_ready(linear_regression_forward(weights, bias, x))
    y_ref = weights * x + bias
    assert y.shape == x.shape
    assert jnp.allclose(y, y_ref, atol=1e-6), "mismatch vs reference (N=50)"

    # 2) Lane-aligned fast path (no pad / no slice), multi-step parallel grid:
    #    rows=256, tile_rows=32 -> tm=32, grid=(8,).
    x2 = jax.random.normal(jax.random.PRNGKey(1), (256, 128), dtype=jnp.float32)
    y2 = jax.block_until_ready(
        linear_regression_forward(weights, bias, x2, tile_rows=32))
    assert jnp.allclose(y2, weights * x2 + bias, atol=1e-6), "mismatch (aligned)"

    # 3) Fast path with a ragged last row-block: rows=200, tm=32 -> grid=(7,),
    #    last block is masked by Pallas (no wrapper padding involved).
    x3 = jax.random.normal(jax.random.PRNGKey(2), (200, 128), dtype=jnp.float32)
    y3 = jax.block_until_ready(
        linear_regression_forward(weights, bias, x3, tile_rows=32))
    assert jnp.allclose(y3, weights * x3 + bias, atol=1e-6), "mismatch (ragged)"

    # 4) Dispatcher path: tiny / unaligned input stays on fused XLA.
    y4 = jax.block_until_ready(linear_regression(weights, bias, x))
    assert jnp.allclose(y4, y_ref, atol=1e-6), "mismatch vs reference (dispatch)"

    print("KERNEL_OK")
</pallas_src>

<mosaic_0001>
module attributes {stable_mosaic.version = 11 : i64} {
  func.func @linreg_kernel(%arg0: i32, %arg1: memref<1xf32, #tpu.memory_space<smem>>, %arg2: memref<1xf32, #tpu.memory_space<smem>>, %arg3: memref<8x128xf32, #tpu.memory_space<vmem>>, %arg4: memref<8x128xf32, #tpu.memory_space<vmem>>) attributes {dimension_semantics = [#tpu.dimension_semantics<parallel>], iteration_bounds = array<i64: 1>, scalar_prefetch = 0 : i64, scratch_operands = 0 : i64, tpu.core_type = #tpu.core_type<tc>, window_params = [{transform_indices = @transform_0, window_bounds = array<i64: 1>}, {transform_indices = @transform_1, window_bounds = array<i64: 1>}, {transform_indices = @transform_2, window_bounds = array<i64: 8, 128>}, {transform_indices = @transform_3, window_bounds = array<i64: 8, 128>}]} {
    %c0 = arith.constant 0 : index
    %0 = memref.load %arg1[%c0] : memref<1xf32, #tpu.memory_space<smem>>
    %c0_0 = arith.constant 0 : index
    %1 = memref.load %arg2[%c0_0] : memref<1xf32, #tpu.memory_space<smem>>
    %c0_1 = arith.constant 0 : index
    %c0_2 = arith.constant 0 : index
    %2 = vector.load %arg3[%c0_1, %c0_2] : memref<8x128xf32, #tpu.memory_space<vmem>>, vector<8x128xf32>
    %3 = vector.broadcast %0 : f32 to vector<8x128xf32>
    %4 = arith.mulf %3, %2 : vector<8x128xf32>
    %5 = vector.broadcast %1 : f32 to vector<8x128xf32>
    %6 = arith.addf %4, %5 : vector<8x128xf32>
    %c0_3 = arith.constant 0 : index
    %c0_4 = arith.constant 0 : index
    %7 = vector.load %arg4[%c0_3, %c0_4] : memref<8x128xf32, #tpu.memory_space<vmem>>, vector<8x128xf32>
    tpu.vector_store %arg4[%c0_3, %c0_4], %6 {strides = array<i32>} : memref<8x128xf32, #tpu.memory_space<vmem>>, vector<8x128xf32>,
    return
  }
  func.func @transform_0(%arg0: i32) -> i32 {
    %c0_i32 = arith.constant 0 : i32
    %c0_i32_0 = arith.constant 0 : i32
    return %c0_i32 : i32
  }
  func.func @transform_1(%arg0: i32) -> i32 {
    %c0_i32 = arith.constant 0 : i32
    %c0_i32_0 = arith.constant 0 : i32
    return %c0_i32 : i32
  }
  func.func @transform_2(%arg0: i32) -> (i32, i32) {
    %c0_i32 = arith.constant 0 : i32
    %c0_i32_0 = arith.constant 0 : i32
    return %arg0, %c0_i32 : i32, i32
  }
  func.func @transform_3(%arg0: i32) -> (i32, i32) {
    %c0_i32 = arith.constant 0 : i32
    %c0_i32_0 = arith.constant 0 : i32
    return %arg0, %c0_i32 : i32, i32
  }
}

</mosaic_0001>

<llo_original>
// kernel: tpu_custom_call.1
$region0: #{tpu_custom_call.1}
  #allocation0 [shape = 'u32[]', space=smem, size = 0x4, offset = 0x4, fixed_abs, tag = 'smem constant byte address 0x4 - core index']
  #allocation1 [shape = 'u32[144,128]{1,0:T(1,128)}', space=vmem, size = 0x12000, scoped, tag = 'internal scratch']
  #allocation2 [shape = 'f32[1]{0:T(128)S(6)}', space=smem, size = 0x200, scoped, tag = 'scoped memory for tpu_custom_call.1']
  #allocation3 [shape = 'f32[1]{0:T(128)S(6)}', space=smem, size = 0x200, scoped, tag = 'scoped memory for tpu_custom_call.1']
  %s0 = inlined_call_operand.<no memory space> [shape: f32[1], index: 0, kind: input, shape index: {}]
  %s1 = inlined_call_operand.<no memory space> [shape: f32[1], index: 1, kind: input, shape index: {}]
  %s2 = inlined_call_operand.hbm [shape: f32[8,128], index: 2, kind: input, shape index: {}]
  %s3 = inlined_call_operand.hbm [shape: f32[8,128], index: 3, kind: output, shape index: {}]
  %s4 = sld [smem:[#allocation0]]
  $region26: #{tpu_custom_call.1} parent=0
    _
  %s6 = ssub.s32 1, %s4
  %s7 = scalar_select 0, %s6, %s4
  %8 = sst [smem:[#allocation2]] %s0
  %9 = sst [smem:[#allocation3]] %s1
  $region1: #{tpu_custom_call.1} parent=0
    #allocation4 [shape = 'u8[4096]{0}', space=vmem, size = 0x1000, scoped, tag = 'input window, operand 2, single buffered']
    #allocation5 [shape = 's32[1]{0}', space=sflag, size = 0x4, scoped, tag = 'scoped memory for tpu_custom_call.1']
    #allocation6 [shape = 's32[1]{0}', space=sflag, size = 0x4, scoped, tag = 'scoped memory for tpu_custom_call.1']
    #allocation7 [shape = 'u8[4096]{0}', space=vmem, size = 0x1000, scoped, tag = 'output window, operand 0, single buffered']
    %10 = vsyncpa [#allocation5], 0
    %11 = vsyncpa [#allocation6], 0
    // Predicated region
    $region2: #{tpu_custom_call.1} parent=1 // pred_check
      _
    $region3: #{tpu_custom_call.1} parent=1 // pred_check_branch
      %13 = sbr.rel (0) target = $region5
    $region4: #{tpu_custom_call.1} parent=1 // pred_region
      _
    $region5: #{tpu_custom_call.1} parent=1 // pred_fallthru
      _
    // Predicated region
    $region6: #{tpu_custom_call.1} parent=1 // pred_check
      _
    $region7: #{tpu_custom_call.1} parent=1 // pred_check_branch
      %15 = sbr.rel (0) target = $region9
    $region8: #{tpu_custom_call.1} parent=1 // pred_region
      _
    $region9: #{tpu_custom_call.1} parent=1 // pred_fallthru
      _
    // Predicated region
    $region10: #{tpu_custom_call.1} parent=1 // pred_check
      _
    $region11: #{tpu_custom_call.1} parent=1 // pred_check_branch
      %17 = sbr.rel (0) target = $region13
    $region12: #{tpu_custom_call.1} parent=1 // pred_region
      %s19 = ssub.s32 128, 128
      %20 = vsyncadd [#allocation5], %s19
      %s22 = sshll.u32 [#allocation4], 4
      %s23 = int_to_ptr.vmem [resolvable:$true] %s22
      %25 = dma.hbm_to_vmem [thread:$0]  %s2, 128, %s23, [#allocation5]
    $region13: #{tpu_custom_call.1} parent=1 // pred_fallthru
      _
    // Predicated region
    $region14: #{tpu_custom_call.1} parent=1 // pred_check
      _
    $region15: #{tpu_custom_call.1} parent=1 // pred_check_branch
      %27 = sbr.rel (0) target = $region17
    $region16: #{tpu_custom_call.1} parent=1 // pred_region
      %28 = dma.done [#allocation5], 128
    $region17: #{tpu_custom_call.1} parent=1 // pred_fallthru
      _
    %s29 = sld [smem:[#allocation2]]
    %s30 = sld [smem:[#allocation3]]
    %v31 = vld [vmem:[#allocation4] sm:$0xff]
    %v32 = vstv %s29
    %v33 = vmul.f32 %v32, %v31
    %v34 = vstv %s30
    %v35 = vadd.f32 %v33, %v34
    %36 = vst [vmem:[#allocation7] sm:$0xff] %v35
    // Predicated region
    $region18: #{tpu_custom_call.1} parent=1 // pred_check
      _
    $region19: #{tpu_custom_call.1} parent=1 // pred_check_branch
      %38 = sbr.rel (0) target = $region21
    $region20: #{tpu_custom_call.1} parent=1 // pred_region
      %s40 = ssub.s32 128, 128
      %41 = vsyncadd [#allocation6], %s40
      %s43 = sshll.u32 [#allocation7], 4
      %s44 = int_to_ptr.vmem [resolvable:$true] %s43
      %46 = dma.vmem_to_hbm [thread:$0]  %s44, 128, %s3, [#allocation6]
    $region21: #{tpu_custom_call.1} parent=1 // pred_fallthru
      _
    // Predicated region
    $region22: #{tpu_custom_call.1} parent=1 // pred_check
      _
    $region23: #{tpu_custom_call.1} parent=1 // pred_check_branch
      %48 = sbr.rel (0) target = $region25
    $region24: #{tpu_custom_call.1} parent=1 // pred_region
      %49 = dma.done [#allocation6], 128
    $region25: #{tpu_custom_call.1} parent=1 // pred_fallthru
      _
    %50 = vsyncpa [#allocation5], 1
    %51 = vsyncpa [#allocation6], 1

</llo_original>
